<compile_context>
chip_gen: v5e
topology: v5e:2x2
jax: 0.10.0
libtpu: 0.0.40
codegen_flags: <defaults>
</compile_context>

<pallas_src>
import functools

import jax
import jax.numpy as jnp
from jax.experimental import pallas as pl
from jax.experimental.pallas import tpu as pltpu

label_num = 9

LANE = 128     # vreg lane width  (last dim)
SUBLANE = 8    # vreg sublane width (second-to-last dim)


def _round_up(x, m):
    return ((x + m - 1) // m) * m


def _pad2d(a, rows, cols):
    return jnp.pad(a, ((0, rows - a.shape[0]), (0, cols - a.shape[1])))


# ---------------------------------------------------------------------------
# Fused MLP kernel: ReLU on all hidden layers, exact Sigmoid on the last.
# refs = (x_ref, w0, b0, w1, b1, ..., o_ref)
# ---------------------------------------------------------------------------
def _fused_mlp_kernel(*refs, num_layers: int):
    x_ref = refs[0]
    o_ref = refs[-1]
    wb_refs = refs[1:-1]

    h = x_ref[...]                                       # (TB, D0p) bf16
    for l in range(num_layers):
        w = wb_refs[2 * l][...]                          # (Dlp, Dl1p) bf16
        b = wb_refs[2 * l + 1][...]                      # (1, Dl1p)   f32
        # astype is a no-op for the (already bf16) first layer input.
        y = jnp.dot(h.astype(jnp.bfloat16), w,
                    preferred_element_type=jnp.float32) + b
        if l < num_layers - 1:
            h = jnp.maximum(y, 0.0)                      # f32 ReLU (VPU)
        else:
            h = 1.0 / (1.0 + jnp.exp(-y))                # exact sigmoid
    o_ref[...] = h.astype(o_ref.dtype)


# ---------------------------------------------------------------------------
# FC module equivalent
# ---------------------------------------------------------------------------
def init_fc_params(key, inputlen, outputlen=label_num, hidden=(1000, 200, 50)):
    """Deterministic init mimicking torch.nn.Linear default (uniform +/- 1/sqrt(fan_in))."""
    nnum = [inputlen, *hidden, outputlen]
    params = []
    for i in range(len(nnum) - 1):
        fan_in, fan_out = nnum[i], nnum[i + 1]
        key, kw, kb = jax.random.split(key, 3)
        bound = 1.0 / (fan_in ** 0.5)
        # torch stores weight as (out, in); we store its transpose (in, out).
        w = jax.random.uniform(kw, (fan_in, fan_out), jnp.float32, -bound, bound)
        b = jax.random.uniform(kb, (fan_out,), jnp.float32, -bound, bound)
        params.append((w, b))
    return params


def fc_forward(params, inputs, images=None, *, batch_tile=512):
    """Matches FC.forward (ReLU hidden layers, Sigmoid output). `images` is unused."""
    del images
    B, in_dim = inputs.shape
    num_layers = len(params)

    # Lane-pad every feature dim to a multiple of 128 (lane-dense loads/stores,
    # MXU-aligned K/N). Padding is mathematically inert (zero rows/cols).
    dims = [in_dim] + [w.shape[1] for w, _ in params]
    dims_p = [_round_up(d, LANE) for d in dims]

    # Per-layer weight (bf16) + bias (f32) bytes, VMEM-resident for all tiles.
    w_total_bytes = sum(dims_p[l] * dims_p[l + 1] * 2 + dims_p[l + 1] * 4
                        for l in range(num_layers))

    # Generation-aware VMEM budget (~85% of physical VMEM per TensorCore).
    try:
        vmem_cap = int(pltpu.get_tpu_info().vmem_capacity_bytes)
    except Exception:
        vmem_cap = 64 << 20  # conservative (v7x per-TC size)
    vmem_budget = int(0.85 * vmem_cap)

    def _usage(tb):
        # 2x bf16 input tiles, 2x f32 output tiles, weights (over-estimated as
        # double-buffered for safety), ~3 live f32 activation slabs, slack.
        return (2 * tb * dims_p[0] * 2
                + 2 * tb * dims_p[-1] * 4
                + 2 * w_total_bytes
                + 3 * tb * max(dims_p) * 4
                + (4 << 20))

    # Tile the batch: even-sized tiles (<=7 padded rows each); small batches are
    # split into >=2 grid steps so both v7x TensorCores get work.
    n_tiles = max(1, pl.cdiv(B, batch_tile))
    if n_tiles == 1 and B > SUBLANE:
        n_tiles = 2
    TB = _round_up(pl.cdiv(B, n_tiles), SUBLANE)
    while _usage(TB) > vmem_budget and TB > SUBLANE:
        TB = _round_up(pl.cdiv(TB, 2), SUBLANE)
    n_tiles = pl.cdiv(B, TB)
    Bp = n_tiles * TB
    grid = (n_tiles,)
    vmem_limit = int(min(max(_usage(TB), 32 << 20), vmem_budget))

    # Inputs: bf16 (halves the dominant streaming DMA); weights bf16; biases f32.
    x_p = _pad2d(inputs.astype(jnp.bfloat16), Bp, dims_p[0])
    flat_inputs = [x_p]
    for l, (w, b) in enumerate(params):
        flat_inputs.append(_pad2d(w, dims_p[l], dims_p[l + 1]).astype(jnp.bfloat16))
        flat_inputs.append(_pad2d(b.reshape(1, -1).astype(jnp.float32), 1, dims_p[l + 1]))

    def _build_specs(weight_mode):
        in_specs = [pl.BlockSpec((TB, dims_p[0]), lambda i: (i, 0))]
        kw = {} if weight_mode is None else {"pipeline_mode": weight_mode}
        for l in range(num_layers):
            # Constant index_map -> weights/biases stay VMEM-resident across tiles.
            in_specs.append(
                pl.BlockSpec((dims_p[l], dims_p[l + 1]), lambda i: (0, 0), **kw))
            in_specs.append(
                pl.BlockSpec((1, dims_p[l + 1]), lambda i: (0, 0), **kw))
        return in_specs

    def _run(weight_mode):
        return pl.pallas_call(
            functools.partial(_fused_mlp_kernel, num_layers=num_layers),
            out_shape=jax.ShapeDtypeStruct((Bp, dims_p[-1]), jnp.float32),
            grid=grid,
            in_specs=_build_specs(weight_mode),
            out_specs=pl.BlockSpec((TB, dims_p[-1]), lambda i: (i, 0)),
            compiler_params=pltpu.CompilerParams(
                dimension_semantics=("parallel",),
                vmem_limit_bytes=vmem_limit,
            ),
        )(*flat_inputs)

    # Single-buffer the grid-invariant weights; fall back to defaults if the
    # installed JAX rejects Buffered(1).
    if hasattr(pl, "Buffered"):
        try:
            out_p = _run(pl.Buffered(1))
        except Exception:
            out_p = _run(None)
    else:
        out_p = _run(None)

    # Strip batch + lane padding.
    return out_p[:B, :dims[-1]]


# Pure-JAX (f32) reference for a correctness sanity check.
def fc_forward_ref(params, inputs):
    x = inputs
    n = len(params)
    for num, (w, b) in enumerate(params):
        y = x @ w + b
        x = jax.nn.sigmoid(y) if num == n - 1 else jax.nn.relu(y)
    return x


if __name__ == "__main__":
    # Small shapes consistent with the module's forward (batch, inputlen) -> (batch, label_num).
    inputlen = 48          # stand-in for 26 * 7 * 24 at small scale
    hidden = (64, 32, 16)  # stand-in for [1000, 200, 50]
    outputlen = label_num  # 9

    key = jax.random.PRNGKey(0)
    key, kx, ki = jax.random.split(key, 3)
    params = init_fc_params(key, inputlen, outputlen, hidden)

    ok = True
    for batch in (2, 20):  # single-tile and multi-tile (split) grid paths
        kx, kb = jax.random.split(kx)
        inputs = jax.random.normal(kb, (batch, inputlen), jnp.float32)
        images = jax.random.normal(ki, (batch, 4, 16, 16), jnp.float32)  # unused, as in the module

        out = fc_forward(params, inputs, images)
        out = jax.block_until_ready(out)

        ref = fc_forward_ref(params, inputs)
        assert out.shape == (batch, outputlen), out.shape
        # bf16 inputs/weights on the MXU -> modest tolerance vs f32 reference.
        ok = ok and bool(jnp.allclose(out, ref, atol=5e-2, rtol=5e-2))

    assert ok, "mismatch vs reference"
    print("KERNEL_OK")
</pallas_src>

<mosaic_0001>
module attributes {stable_mosaic.version = 11 : i64} {
  func.func @_fused_mlp_kernel(%arg0: i32, %arg1: memref<8x128xbf16, #tpu.memory_space<vmem>>, %arg2: memref<128x128xbf16, #tpu.memory_space<vmem>>, %arg3: memref<1x128xf32, #tpu.memory_space<vmem>>, %arg4: memref<128x128xbf16, #tpu.memory_space<vmem>>, %arg5: memref<1x128xf32, #tpu.memory_space<vmem>>, %arg6: memref<128x128xbf16, #tpu.memory_space<vmem>>, %arg7: memref<1x128xf32, #tpu.memory_space<vmem>>, %arg8: memref<128x128xbf16, #tpu.memory_space<vmem>>, %arg9: memref<1x128xf32, #tpu.memory_space<vmem>>, %arg10: memref<8x128xf32, #tpu.memory_space<vmem>>) attributes {dimension_semantics = [#tpu.dimension_semantics<parallel>], iteration_bounds = array<i64: 1>, scalar_prefetch = 0 : i64, scratch_operands = 0 : i64, tpu.core_type = #tpu.core_type<tc>, window_params = [{transform_indices = @transform_0, window_bounds = array<i64: 8, 128>}, {pipeline_mode = #tpu.pipeline_mode<synchronous>, transform_indices = @transform_1, window_bounds = array<i64: 128, 128>}, {pipeline_mode = #tpu.pipeline_mode<synchronous>, transform_indices = @transform_2, window_bounds = array<i64: 1, 128>}, {pipeline_mode = #tpu.pipeline_mode<synchronous>, transform_indices = @transform_3, window_bounds = array<i64: 128, 128>}, {pipeline_mode = #tpu.pipeline_mode<synchronous>, transform_indices = @transform_4, window_bounds = array<i64: 1, 128>}, {pipeline_mode = #tpu.pipeline_mode<synchronous>, transform_indices = @transform_5, window_bounds = array<i64: 128, 128>}, {pipeline_mode = #tpu.pipeline_mode<synchronous>, transform_indices = @transform_6, window_bounds = array<i64: 1, 128>}, {pipeline_mode = #tpu.pipeline_mode<synchronous>, transform_indices = @transform_7, window_bounds = array<i64: 128, 128>}, {pipeline_mode = #tpu.pipeline_mode<synchronous>, transform_indices = @transform_8, window_bounds = array<i64: 1, 128>}, {transform_indices = @transform_9, window_bounds = array<i64: 8, 128>}]} {
    %c0 = arith.constant 0 : index
    %c0_0 = arith.constant 0 : index
    %0 = vector.load %arg1[%c0, %c0_0] : memref<8x128xbf16, #tpu.memory_space<vmem>>, vector<8x128xbf16>
    %c0_1 = arith.constant 0 : index
    %c0_2 = arith.constant 0 : index
    %1 = vector.load %arg2[%c0_1, %c0_2] : memref<128x128xbf16, #tpu.memory_space<vmem>>, vector<128x128xbf16>
    %c0_3 = arith.constant 0 : index
    %c0_4 = arith.constant 0 : index
    %2 = vector.load %arg3[%c0_3, %c0_4] : memref<1x128xf32, #tpu.memory_space<vmem>>, vector<1x128xf32>
    %cst = arith.constant dense<0.000000e+00> : vector<8x128xf32>
    %3 = tpu.matmul %0, %1, %cst {dimension_numbers = #tpu.dot_dimension_numbers<[1], [0], [0], [1], [0, 0, 1, 1], [], []>} : vector<8x128xbf16>, vector<128x128xbf16>, vector<8x128xf32> -> vector<8x128xf32>
    %4 = vector.broadcast %2 : vector<1x128xf32> to vector<8x128xf32>
    %5 = arith.addf %3, %4 : vector<8x128xf32>
    %cst_5 = arith.constant 0.000000e+00 : f32
    %6 = vector.broadcast %cst_5 : f32 to vector<8x128xf32>
    %7 = arith.maximumf %5, %6 : vector<8x128xf32>
    %c0_6 = arith.constant 0 : index
    %c0_7 = arith.constant 0 : index
    %8 = vector.load %arg4[%c0_6, %c0_7] : memref<128x128xbf16, #tpu.memory_space<vmem>>, vector<128x128xbf16>
    %c0_8 = arith.constant 0 : index
    %c0_9 = arith.constant 0 : index
    %9 = vector.load %arg5[%c0_8, %c0_9] : memref<1x128xf32, #tpu.memory_space<vmem>>, vector<1x128xf32>
    %10 = arith.truncf %7 : vector<8x128xf32> to vector<8x128xbf16>
    %cst_10 = arith.constant dense<0.000000e+00> : vector<8x128xf32>
    %11 = tpu.matmul %10, %8, %cst_10 {dimension_numbers = #tpu.dot_dimension_numbers<[1], [0], [0], [1], [0, 0, 1, 1], [], []>} : vector<8x128xbf16>, vector<128x128xbf16>, vector<8x128xf32> -> vector<8x128xf32>
    %12 = vector.broadcast %9 : vector<1x128xf32> to vector<8x128xf32>
    %13 = arith.addf %11, %12 : vector<8x128xf32>
    %cst_11 = arith.constant 0.000000e+00 : f32
    %14 = vector.broadcast %cst_11 : f32 to vector<8x128xf32>
    %15 = arith.maximumf %13, %14 : vector<8x128xf32>
    %c0_12 = arith.constant 0 : index
    %c0_13 = arith.constant 0 : index
    %16 = vector.load %arg6[%c0_12, %c0_13] : memref<128x128xbf16, #tpu.memory_space<vmem>>, vector<128x128xbf16>
    %c0_14 = arith.constant 0 : index
    %c0_15 = arith.constant 0 : index
    %17 = vector.load %arg7[%c0_14, %c0_15] : memref<1x128xf32, #tpu.memory_space<vmem>>, vector<1x128xf32>
    %18 = arith.truncf %15 : vector<8x128xf32> to vector<8x128xbf16>
    %cst_16 = arith.constant dense<0.000000e+00> : vector<8x128xf32>
    %19 = tpu.matmul %18, %16, %cst_16 {dimension_numbers = #tpu.dot_dimension_numbers<[1], [0], [0], [1], [0, 0, 1, 1], [], []>} : vector<8x128xbf16>, vector<128x128xbf16>, vector<8x128xf32> -> vector<8x128xf32>
    %20 = vector.broadcast %17 : vector<1x128xf32> to vector<8x128xf32>
    %21 = arith.addf %19, %20 : vector<8x128xf32>
    %cst_17 = arith.constant 0.000000e+00 : f32
    %22 = vector.broadcast %cst_17 : f32 to vector<8x128xf32>
    %23 = arith.maximumf %21, %22 : vector<8x128xf32>
    %c0_18 = arith.constant 0 : index
    %c0_19 = arith.constant 0 : index
    %24 = vector.load %arg8[%c0_18, %c0_19] : memref<128x128xbf16, #tpu.memory_space<vmem>>, vector<128x128xbf16>
    %c0_20 = arith.constant 0 : index
    %c0_21 = arith.constant 0 : index
    %25 = vector.load %arg9[%c0_20, %c0_21] : memref<1x128xf32, #tpu.memory_space<vmem>>, vector<1x128xf32>
    %26 = arith.truncf %23 : vector<8x128xf32> to vector<8x128xbf16>
    %cst_22 = arith.constant dense<0.000000e+00> : vector<8x128xf32>
    %27 = tpu.matmul %26, %24, %cst_22 {dimension_numbers = #tpu.dot_dimension_numbers<[1], [0], [0], [1], [0, 0, 1, 1], [], []>} : vector<8x128xbf16>, vector<128x128xbf16>, vector<8x128xf32> -> vector<8x128xf32>
    %28 = vector.broadcast %25 : vector<1x128xf32> to vector<8x128xf32>
    %29 = arith.addf %27, %28 : vector<8x128xf32>
    %cst_23 = arith.constant 0.000000e+00 : f32
    %30 = vector.broadcast %cst_23 : f32 to vector<8x128xf32>
    %31 = arith.subf %30, %29 : vector<8x128xf32>
    %32 = math.exp %31 : vector<8x128xf32>
    %cst_24 = arith.constant 1.000000e+00 : f32
    %33 = vector.broadcast %cst_24 : f32 to vector<8x128xf32>
    %34 = arith.addf %33, %32 : vector<8x128xf32>
    %cst_25 = arith.constant 1.000000e+00 : f32
    %35 = vector.broadcast %cst_25 : f32 to vector<8x128xf32>
    %36 = arith.divf %35, %34 : vector<8x128xf32>
    %c0_26 = arith.constant 0 : index
    %c0_27 = arith.constant 0 : index
    %37 = vector.load %arg10[%c0_26, %c0_27] : memref<8x128xf32, #tpu.memory_space<vmem>>, vector<8x128xf32>
    tpu.vector_store %arg10[%c0_26, %c0_27], %36 {strides = array<i32>} : memref<8x128xf32, #tpu.memory_space<vmem>>, vector<8x128xf32>,
    return
  }
  func.func @transform_0(%arg0: i32) -> (i32, i32) {
    %c0_i32 = arith.constant 0 : i32
    %c0_i32_0 = arith.constant 0 : i32
    return %arg0, %c0_i32 : i32, i32
  }
  func.func @transform_1(%arg0: i32) -> (i32, i32) {
    %c0_i32 = arith.constant 0 : i32
    %c0_i32_0 = arith.constant 0 : i32
    %c0_i32_1 = arith.constant 0 : i32
    return %c0_i32, %c0_i32_0 : i32, i32
  }
  func.func @transform_2(%arg0: i32) -> (i32, i32) {
    %c0_i32 = arith.constant 0 : i32
    %c0_i32_0 = arith.constant 0 : i32
    %c0_i32_1 = arith.constant 0 : i32
    return %c0_i32, %c0_i32_0 : i32, i32
  }
  func.func @transform_3(%arg0: i32) -> (i32, i32) {
    %c0_i32 = arith.constant 0 : i32
    %c0_i32_0 = arith.constant 0 : i32
    %c0_i32_1 = arith.constant 0 : i32
    return %c0_i32, %c0_i32_0 : i32, i32
  }
  func.func @transform_4(%arg0: i32) -> (i32, i32) {
    %c0_i32 = arith.constant 0 : i32
    %c0_i32_0 = arith.constant 0 : i32
    %c0_i32_1 = arith.constant 0 : i32
    return %c0_i32, %c0_i32_0 : i32, i32
  }
  func.func @transform_5(%arg0: i32) -> (i32, i32) {
    %c0_i32 = arith.constant 0 : i32
    %c0_i32_0 = arith.constant 0 : i32
    %c0_i32_1 = arith.constant 0 : i32
    return %c0_i32, %c0_i32_0 : i32, i32
  }
  func.func @transform_6(%arg0: i32) -> (i32, i32) {
    %c0_i32 = arith.constant 0 : i32
    %c0_i32_0 = arith.constant 0 : i32
    %c0_i32_1 = arith.constant 0 : i32
    return %c0_i32, %c0_i32_0 : i32, i32
  }
  func.func @transform_7(%arg0: i32) -> (i32, i32) {
    %c0_i32 = arith.constant 0 : i32
    %c0_i32_0 = arith.constant 0 : i32
    %c0_i32_1 = arith.constant 0 : i32
    return %c0_i32, %c0_i32_0 : i32, i32
  }
  func.func @transform_8(%arg0: i32) -> (i32, i32) {
    %c0_i32 = arith.constant 0 : i32
    %c0_i32_0 = arith.constant 0 : i32
    %c0_i32_1 = arith.constant 0 : i32
    return %c0_i32, %c0_i32_0 : i32, i32
  }
  func.func @transform_9(%arg0: i32) -> (i32, i32) {
    %c0_i32 = arith.constant 0 : i32
    %c0_i32_0 = arith.constant 0 : i32
    return %arg0, %c0_i32 : i32, i32
  }
}

module attributes {stable_mosaic.version = 11 : i64} {
  func.func @_fused_mlp_kernel(%arg0: i32, %arg1: memref<8x128xbf16, #tpu.memory_space<vmem>>, %arg2: memref<128x128xbf16, #tpu.memory_space<vmem>>, %arg3: memref<1x128xf32, #tpu.memory_space<vmem>>, %arg4: memref<128x128xbf16, #tpu.memory_space<vmem>>, %arg5: memref<1x128xf32, #tpu.memory_space<vmem>>, %arg6: memref<128x128xbf16, #tpu.memory_space<vmem>>, %arg7: memref<1x128xf32, #tpu.memory_space<vmem>>, %arg8: memref<128x128xbf16, #tpu.memory_space<vmem>>, %arg9: memref<1x128xf32, #tpu.memory_space<vmem>>, %arg10: memref<8x128xf32, #tpu.memory_space<vmem>>) attributes {dimension_semantics = [#tpu.dimension_semantics<parallel>], iteration_bounds = array<i64: 1>, scalar_prefetch = 0 : i64, scratch_operands = 0 : i64, tpu.core_type = #tpu.core_type<tc>, window_params = [{transform_indices = @transform_0, window_bounds = array<i64: 8, 128>}, {pipeline_mode = #tpu.pipeline_mode<synchronous>, transform_indices = @transform_1, window_bounds = array<i64: 128, 128>}, {pipeline_mode = #tpu.pipeline_mode<synchronous>, transform_indices = @transform_2, window_bounds = array<i64: 1, 128>}, {pipeline_mode = #tpu.pipeline_mode<synchronous>, transform_indices = @transform_3, window_bounds = array<i64: 128, 128>}, {pipeline_mode = #tpu.pipeline_mode<synchronous>, transform_indices = @transform_4, window_bounds = array<i64: 1, 128>}, {pipeline_mode = #tpu.pipeline_mode<synchronous>, transform_indices = @transform_5, window_bounds = array<i64: 128, 128>}, {pipeline_mode = #tpu.pipeline_mode<synchronous>, transform_indices = @transform_6, window_bounds = array<i64: 1, 128>}, {pipeline_mode = #tpu.pipeline_mode<synchronous>, transform_indices = @transform_7, window_bounds = array<i64: 128, 128>}, {pipeline_mode = #tpu.pipeline_mode<synchronous>, transform_indices = @transform_8, window_bounds = array<i64: 1, 128>}, {transform_indices = @transform_9, window_bounds = array<i64: 8, 128>}]} {
    %c0 = arith.constant 0 : index
    %c0_0 = arith.constant 0 : index
    %0 = vector.load %arg1[%c0, %c0_0] : memref<8x128xbf16, #tpu.memory_space<vmem>>, vector<8x128xbf16>
    %c0_1 = arith.constant 0 : index
    %c0_2 = arith.constant 0 : index
    %1 = vector.load %arg2[%c0_1, %c0_2] : memref<128x128xbf16, #tpu.memory_space<vmem>>, vector<128x128xbf16>
    %c0_3 = arith.constant 0 : index
    %c0_4 = arith.constant 0 : index
    %2 = vector.load %arg3[%c0_3, %c0_4] : memref<1x128xf32, #tpu.memory_space<vmem>>, vector<1x128xf32>
    %cst = arith.constant dense<0.000000e+00> : vector<8x128xf32>
    %3 = tpu.matmul %0, %1, %cst {dimension_numbers = #tpu.dot_dimension_numbers<[1], [0], [0], [1], [0, 0, 1, 1], [], []>} : vector<8x128xbf16>, vector<128x128xbf16>, vector<8x128xf32> -> vector<8x128xf32>
    %4 = vector.broadcast %2 : vector<1x128xf32> to vector<8x128xf32>
    %5 = arith.addf %3, %4 : vector<8x128xf32>
    %cst_5 = arith.constant 0.000000e+00 : f32
    %6 = vector.broadcast %cst_5 : f32 to vector<8x128xf32>
    %7 = arith.maximumf %5, %6 : vector<8x128xf32>
    %c0_6 = arith.constant 0 : index
    %c0_7 = arith.constant 0 : index
    %8 = vector.load %arg4[%c0_6, %c0_7] : memref<128x128xbf16, #tpu.memory_space<vmem>>, vector<128x128xbf16>
    %c0_8 = arith.constant 0 : index
    %c0_9 = arith.constant 0 : index
    %9 = vector.load %arg5[%c0_8, %c0_9] : memref<1x128xf32, #tpu.memory_space<vmem>>, vector<1x128xf32>
    %10 = arith.truncf %7 : vector<8x128xf32> to vector<8x128xbf16>
    %cst_10 = arith.constant dense<0.000000e+00> : vector<8x128xf32>
    %11 = tpu.matmul %10, %8, %cst_10 {dimension_numbers = #tpu.dot_dimension_numbers<[1], [0], [0], [1], [0, 0, 1, 1], [], []>} : vector<8x128xbf16>, vector<128x128xbf16>, vector<8x128xf32> -> vector<8x128xf32>
    %12 = vector.broadcast %9 : vector<1x128xf32> to vector<8x128xf32>
    %13 = arith.addf %11, %12 : vector<8x128xf32>
    %cst_11 = arith.constant 0.000000e+00 : f32
    %14 = vector.broadcast %cst_11 : f32 to vector<8x128xf32>
    %15 = arith.maximumf %13, %14 : vector<8x128xf32>
    %c0_12 = arith.constant 0 : index
    %c0_13 = arith.constant 0 : index
    %16 = vector.load %arg6[%c0_12, %c0_13] : memref<128x128xbf16, #tpu.memory_space<vmem>>, vector<128x128xbf16>
    %c0_14 = arith.constant 0 : index
    %c0_15 = arith.constant 0 : index
    %17 = vector.load %arg7[%c0_14, %c0_15] : memref<1x128xf32, #tpu.memory_space<vmem>>, vector<1x128xf32>
    %18 = arith.truncf %15 : vector<8x128xf32> to vector<8x128xbf16>
    %cst_16 = arith.constant dense<0.000000e+00> : vector<8x128xf32>
    %19 = tpu.matmul %18, %16, %cst_16 {dimension_numbers = #tpu.dot_dimension_numbers<[1], [0], [0], [1], [0, 0, 1, 1], [], []>} : vector<8x128xbf16>, vector<128x128xbf16>, vector<8x128xf32> -> vector<8x128xf32>
    %20 = vector.broadcast %17 : vector<1x128xf32> to vector<8x128xf32>
    %21 = arith.addf %19, %20 : vector<8x128xf32>
    %cst_17 = arith.constant 0.000000e+00 : f32
    %22 = vector.broadcast %cst_17 : f32 to vector<8x128xf32>
    %23 = arith.maximumf %21, %22 : vector<8x128xf32>
    %c0_18 = arith.constant 0 : index
    %c0_19 = arith.constant 0 : index
    %24 = vector.load %arg8[%c0_18, %c0_19] : memref<128x128xbf16, #tpu.memory_space<vmem>>, vector<128x128xbf16>
    %c0_20 = arith.constant 0 : index
    %c0_21 = arith.constant 0 : index
    %25 = vector.load %arg9[%c0_20, %c0_21] : memref<1x128xf32, #tpu.memory_space<vmem>>, vector<1x128xf32>
    %26 = arith.truncf %23 : vector<8x128xf32> to vector<8x128xbf16>
    %cst_22 = arith.constant dense<0.000000e+00> : vector<8x128xf32>
    %27 = tpu.matmul %26, %24, %cst_22 {dimension_numbers = #tpu.dot_dimension_numbers<[1], [0], [0], [1], [0, 0, 1, 1], [], []>} : vector<8x128xbf16>, vector<128x128xbf16>, vector<8x128xf32> -> vector<8x128xf32>
    %28 = vector.broadcast %25 : vector<1x128xf32> to vector<8x128xf32>
    %29 = arith.addf %27, %28 : vector<8x128xf32>
    %cst_23 = arith.constant 0.000000e+00 : f32
    %30 = vector.broadcast %cst_23 : f32 to vector<8x128xf32>
    %31 = arith.subf %30, %29 : vector<8x128xf32>
    %32 = math.exp %31 : vector<8x128xf32>
    %cst_24 = arith.constant 1.000000e+00 : f32
    %33 = vector.broadcast %cst_24 : f32 to vector<8x128xf32>
    %34 = arith.addf %33, %32 : vector<8x128xf32>
    %cst_25 = arith.constant 1.000000e+00 : f32
    %35 = vector.broadcast %cst_25 : f32 to vector<8x128xf32>
    %36 = arith.divf %35, %34 : vector<8x128xf32>
    %c0_26 = arith.constant 0 : index
    %c0_27 = arith.constant 0 : index
    %37 = vector.load %arg10[%c0_26, %c0_27] : memref<8x128xf32, #tpu.memory_space<vmem>>, vector<8x128xf32>
    tpu.vector_store %arg10[%c0_26, %c0_27], %36 {strides = array<i32>} : memref<8x128xf32, #tpu.memory_space<vmem>>, vector<8x128xf32>,
    return
  }
  func.func @transform_0(%arg0: i32) -> (i32, i32) {
    %c0_i32 = arith.constant 0 : i32
    %c0_i32_0 = arith.constant 0 : i32
    return %arg0, %c0_i32 : i32, i32
  }
  func.func @transform_1(%arg0: i32) -> (i32, i32) {
    %c0_i32 = arith.constant 0 : i32
    %c0_i32_0 = arith.constant 0 : i32
    %c0_i32_1 = arith.constant 0 : i32
    return %c0_i32, %c0_i32_0 : i32, i32
  }
  func.func @transform_2(%arg0: i32) -> (i32, i32) {
    %c0_i32 = arith.constant 0 : i32
    %c0_i32_0 = arith.constant 0 : i32
    %c0_i32_1 = arith.constant 0 : i32
    return %c0_i32, %c0_i32_0 : i32, i32
  }
  func.func @transform_3(%arg0: i32) -> (i32, i32) {
    %c0_i32 = arith.constant 0 : i32
    %c0_i32_0 = arith.constant 0 : i32
    %c0_i32_1 = arith.constant 0 : i32
    return %c0_i32, %c0_i32_0 : i32, i32
  }
  func.func @transform_4(%arg0: i32) -> (i32, i32) {
    %c0_i32 = arith.constant 0 : i32
    %c0_i32_0 = arith.constant 0 : i32
    %c0_i32_1 = arith.constant 0 : i32
    return %c0_i32, %c0_i32_0 : i32, i32
  }
  func.func @transform_5(%arg0: i32) -> (i32, i32) {
    %c0_i32 = arith.constant 0 : i32
    %c0_i32_0 = arith.constant 0 : i32
    %c0_i32_1 = arith.constant 0 : i32
    return %c0_i32, %c0_i32_0 : i32, i32
  }
  func.func @transform_6(%arg0: i32) -> (i32, i32) {
    %c0_i32 = arith.constant 0 : i32
    %c0_i32_0 = arith.constant 0 : i32
    %c0_i32_1 = arith.constant 0 : i32
    return %c0_i32, %c0_i32_0 : i32, i32
  }
  func.func @transform_7(%arg0: i32) -> (i32, i32) {
    %c0_i32 = arith.constant 0 : i32
    %c0_i32_0 = arith.constant 0 : i32
    %c0_i32_1 = arith.constant 0 : i32
    return %c0_i32, %c0_i32_0 : i32, i32
  }
  func.func @transform_8(%arg0: i32) -> (i32, i32) {
    %c0_i32 = arith.constant 0 : i32
    %c0_i32_0 = arith.constant 0 : i32
    %c0_i32_1 = arith.constant 0 : i32
    return %c0_i32, %c0_i32_0 : i32, i32
  }
  func.func @transform_9(%arg0: i32) -> (i32, i32) {
    %c0_i32 = arith.constant 0 : i32
    %c0_i32_0 = arith.constant 0 : i32
    return %arg0, %c0_i32 : i32, i32
  }
}

</mosaic_0001>

<llo_original>
// kernel: tpu_custom_call.1
$region0: #{tpu_custom_call.1}
  #allocation0 [shape = 'u32[]', space=smem, size = 0x4, offset = 0x4, fixed_abs, tag = 'smem constant byte address 0x4 - core index']
  #allocation1 [shape = 'u32[72,128]{1,0:T(1,128)}', space=vmem, size = 0x9000, scoped, tag = 'internal scratch']
  %s0 = inlined_call_operand.hbm [shape: bf16[8,128], index: 0, kind: input, shape index: {}]
  %s1 = inlined_call_operand.hbm [shape: bf16[128,128], index: 1, kind: input, shape index: {}]
  %s2 = inlined_call_operand.vmem [shape: f32[1,128], index: 2, kind: input, shape index: {}]
  %s3 = inlined_call_operand.hbm [shape: bf16[128,128], index: 3, kind: input, shape index: {}]
  %s4 = inlined_call_operand.vmem [shape: f32[1,128], index: 4, kind: input, shape index: {}]
  %s5 = inlined_call_operand.hbm [shape: bf16[128,128], index: 5, kind: input, shape index: {}]
  %s6 = inlined_call_operand.vmem [shape: f32[1,128], index: 6, kind: input, shape index: {}]
  %s7 = inlined_call_operand.hbm [shape: bf16[128,128], index: 7, kind: input, shape index: {}]
  %s8 = inlined_call_operand.vmem [shape: f32[1,128], index: 8, kind: input, shape index: {}]
  %s9 = inlined_call_operand.hbm [shape: f32[8,128], index: 9, kind: output, shape index: {}]
  %s10 = sld [smem:[#allocation0]]
  $region66: #{tpu_custom_call.1} parent=0
    _
  %s12 = ssub.s32 1, %s10
  %s13 = scalar_select 0, %s12, %s10
  $region1: #{tpu_custom_call.1} parent=0
    #allocation2 [shape = 'u8[2048]{0}', space=vmem, size = 0x800, scoped, tag = 'input window, operand 0, single buffered']
    #allocation3 [shape = 's32[1]{0}', space=sflag, size = 0x4, scoped, tag = 'scoped memory for tpu_custom_call.1']
    #allocation4 [shape = 's32[1]{0}', space=sflag, size = 0x4, scoped, tag = 'scoped memory for tpu_custom_call.1']
    #allocation5 [shape = 'u8[32768]{0}', space=vmem, size = 0x8000, scoped, tag = 'input window, operand 1, single buffered']
    #allocation6 [shape = 's32[1]{0}', space=sflag, size = 0x4, scoped, tag = 'scoped memory for tpu_custom_call.1']
    #allocation7 [shape = 'u8[32768]{0}', space=vmem, size = 0x8000, scoped, tag = 'input window, operand 3, single buffered']
    #allocation8 [shape = 'u8[32768]{0}', space=vmem, size = 0x8000, scoped, tag = 'input window, operand 5, single buffered']
    #allocation9 [shape = 's32[1]{0}', space=sflag, size = 0x4, scoped, tag = 'scoped memory for tpu_custom_call.1']
    #allocation10 [shape = 'u8[32768]{0}', space=vmem, size = 0x8000, scoped, tag = 'input window, operand 7, single buffered']
    #allocation11 [shape = 'u8[4096]{0}', space=vmem, size = 0x1000, scoped, tag = 'output window, operand 0, single buffered']
    %14 = vsyncpa [#allocation3], 0
    %15 = vsyncpa [#allocation6], 0
    %16 = vsyncpa [#allocation9], 0
    %17 = vsyncpa [#allocation4], 0
    // Predicated region
    $region2: #{tpu_custom_call.1} parent=1 // pred_check
      _
    $region3: #{tpu_custom_call.1} parent=1 // pred_check_branch
      %19 = sbr.rel (0) target = $region5
    $region4: #{tpu_custom_call.1} parent=1 // pred_region
      %21 = vsyncadd [#allocation3], 0
      %s23 = sshll.u32 %s0, 4
      %s24 = int_to_ptr.hbm [resolvable:$true] %s23
      %s25 = sshll.u32 [#allocation2], 4
      %s26 = int_to_ptr.vmem [resolvable:$true] %s25
      %28 = dma.hbm_to_vmem [thread:$0]  %s24, 64, %s26, [#allocation3]
    $region5: #{tpu_custom_call.1} parent=1 // pred_fallthru
      _
    // Predicated region
    $region6: #{tpu_custom_call.1} parent=1 // pred_check
      _
    $region7: #{tpu_custom_call.1} parent=1 // pred_check_branch
      %30 = sbr.rel (0) target = $region9
    $region8: #{tpu_custom_call.1} parent=1 // pred_region
      %32 = vsyncadd [#allocation6], 0
      %s33 = sshll.u32 %s1, 4
      %s34 = int_to_ptr.hbm [resolvable:$true] %s33
      %s35 = sshll.u32 [#allocation5], 4
      %s36 = int_to_ptr.vmem [resolvable:$true] %s35
      %41 = dma.hbm_to_vmem [thread:$0]  %s34, 1024, %s36, [#allocation6], 64, 64, 4
    $region9: #{tpu_custom_call.1} parent=1 // pred_fallthru
      _
    // Predicated region
    $region10: #{tpu_custom_call.1} parent=1 // pred_check
      _
    $region11: #{tpu_custom_call.1} parent=1 // pred_check_branch
      %43 = sbr.rel (0) target = $region13
    $region12: #{tpu_custom_call.1} parent=1 // pred_region
      _
    $region13: #{tpu_custom_call.1} parent=1 // pred_fallthru
      _
    // Predicated region
    $region14: #{tpu_custom_call.1} parent=1 // pred_check
      _
    $region15: #{tpu_custom_call.1} parent=1 // pred_check_branch
      %45 = sbr.rel (0) target = $region17
    $region16: #{tpu_custom_call.1} parent=1 // pred_region
      %47 = vsyncadd [#allocation6], 0
      %s48 = sshll.u32 %s3, 4
      %s49 = int_to_ptr.hbm [resolvable:$true] %s48
      %s50 = sshll.u32 [#allocation7], 4
      %s51 = int_to_ptr.vmem [resolvable:$true] %s50
      %56 = dma.hbm_to_vmem [thread:$0]  %s49, 1024, %s51, [#allocation6], 64, 64, 4
    $region17: #{tpu_custom_call.1} parent=1 // pred_fallthru
      _
    // Predicated region
    $region18: #{tpu_custom_call.1} parent=1 // pred_check
      _
    $region19: #{tpu_custom_call.1} parent=1 // pred_check_branch
      %58 = sbr.rel (0) target = $region21
    $region20: #{tpu_custom_call.1} parent=1 // pred_region
      _
    $region21: #{tpu_custom_call.1} parent=1 // pred_fallthru
      _
    // Predicated region
    $region22: #{tpu_custom_call.1} parent=1 // pred_check
      _
    $region23: #{tpu_custom_call.1} parent=1 // pred_check_branch
      %60 = sbr.rel (0) target = $region25
    $region24: #{tpu_custom_call.1} parent=1 // pred_region
      %62 = vsyncadd [#allocation9], 0
      %s63 = sshll.u32 %s5, 4
      %s64 = int_to_ptr.hbm [resolvable:$true] %s63
      %s65 = sshll.u32 [#allocation8], 4
      %s66 = int_to_ptr.vmem [resolvable:$true] %s65
      %71 = dma.hbm_to_vmem [thread:$0]  %s64, 1024, %s66, [#allocation9], 64, 64, 4
    $region25: #{tpu_custom_call.1} parent=1 // pred_fallthru
      _
    // Predicated region
    $region26: #{tpu_custom_call.1} parent=1 // pred_check
      _
    $region27: #{tpu_custom_call.1} parent=1 // pred_check_branch
      %73 = sbr.rel (0) target = $region29
    $region28: #{tpu_custom_call.1} parent=1 // pred_region
      _
    $region29: #{tpu_custom_call.1} parent=1 // pred_fallthru
      _
    // Predicated region
    $region30: #{tpu_custom_call.1} parent=1 // pred_check
      _
    $region31: #{tpu_custom_call.1} parent=1 // pred_check_branch
      %75 = sbr.rel (0) target = $region33
    $region32: #{tpu_custom_call.1} parent=1 // pred_region
      %77 = vsyncadd [#allocation9], 0
      %s78 = sshll.u32 %s7, 4
      %s79 = int_to_ptr.hbm [resolvable:$true] %s78
      %s80 = sshll.u32 [#allocation10], 4
      %s81 = int_to_ptr.vmem [resolvable:$true] %s80
      %86 = dma.hbm_to_vmem [thread:$0]  %s79, 1024, %s81, [#allocation9], 64, 64, 4
    $region33: #{tpu_custom_call.1} parent=1 // pred_fallthru
      _
    // Predicated region
    $region34: #{tpu_custom_call.1} parent=1 // pred_check
      _
    $region35: #{tpu_custom_call.1} parent=1 // pred_check_branch
      %88 = sbr.rel (0) target = $region37
    $region36: #{tpu_custom_call.1} parent=1 // pred_region
      _
    $region37: #{tpu_custom_call.1} parent=1 // pred_fallthru
      _
    // Predicated region
    $region38: #{tpu_custom_call.1} parent=1 // pred_check
      _
    $region39: #{tpu_custom_call.1} parent=1 // pred_check_branch
      %90 = sbr.rel (0) target = $region41
    $region40: #{tpu_custom_call.1} parent=1 // pred_region
      %92 = dma.done [#allocation3], 64
    $region41: #{tpu_custom_call.1} parent=1 // pred_fallthru
      _
    // Predicated region
    $region42: #{tpu_custom_call.1} parent=1 // pred_check
      _
    $region43: #{tpu_custom_call.1} parent=1 // pred_check_branch
      %94 = sbr.rel (0) target = $region45
    $region44: #{tpu_custom_call.1} parent=1 // pred_region
      %96 = dma.done [#allocation6], 1024
    $region45: #{tpu_custom_call.1} parent=1 // pred_fallthru
      _
    // Predicated region
    $region46: #{tpu_custom_call.1} parent=1 // pred_check
      _
    $region47: #{tpu_custom_call.1} parent=1 // pred_check_branch
      %98 = sbr.rel (0) target = $region49
    $region48: #{tpu_custom_call.1} parent=1 // pred_region
      %100 = dma.done [#allocation6], 1024
    $region49: #{tpu_custom_call.1} parent=1 // pred_fallthru
      _
    // Predicated region
    $region50: #{tpu_custom_call.1} parent=1 // pred_check
      _
    $region51: #{tpu_custom_call.1} parent=1 // pred_check_branch
      %102 = sbr.rel (0) target = $region53
    $region52: #{tpu_custom_call.1} parent=1 // pred_region
      %104 = dma.done [#allocation9], 1024
    $region53: #{tpu_custom_call.1} parent=1 // pred_fallthru
      _
    // Predicated region
    $region54: #{tpu_custom_call.1} parent=1 // pred_check
      _
    $region55: #{tpu_custom_call.1} parent=1 // pred_check_branch
      %106 = sbr.rel (0) target = $region57
    $region56: #{tpu_custom_call.1} parent=1 // pred_region
      %108 = dma.done [#allocation9], 1024
    $region57: #{tpu_custom_call.1} parent=1 // pred_fallthru
      _
    %v109 = vld [vmem:[#allocation2] sm:$0xf]
    %v110 = vld [vmem:[#allocation5] sm:$0xf]
    %v111 = vld [vmem:[#allocation5 + $0x4] sm:$0xf]
    %v112 = vld [vmem:[#allocation5 + $0x8] sm:$0xf]
    %v113 = vld [vmem:[#allocation5 + $0xc] sm:$0xf]
    %v114 = vld [vmem:[#allocation5 + $0x10] sm:$0xf]
    %v115 = vld [vmem:[#allocation5 + $0x14] sm:$0xf]
    %v116 = vld [vmem:[#allocation5 + $0x18] sm:$0xf]
    %v117 = vld [vmem:[#allocation5 + $0x1c] sm:$0xf]
    %v118 = vld [vmem:[#allocation5 + $0x20] sm:$0xf]
    %v119 = vld [vmem:[#allocation5 + $0x24] sm:$0xf]
    %v120 = vld [vmem:[#allocation5 + $0x28] sm:$0xf]
    %v121 = vld [vmem:[#allocation5 + $0x2c] sm:$0xf]
    %v122 = vld [vmem:[#allocation5 + $0x30] sm:$0xf]
    %v123 = vld [vmem:[#allocation5 + $0x34] sm:$0xf]
    %v124 = vld [vmem:[#allocation5 + $0x38] sm:$0xf]
    %v125 = vld [vmem:[#allocation5 + $0x3c] sm:$0xf]
    %v126 = vld [vmem:[%s2] sm:$0x1]
    %v128 = vperm.slane %v126, 0
    %v146 = vunpack.c.l.b16 %v110
    %v147 = vunpack.c.l.b16 %v111
    %v148 = vunpack.c.l.b16 %v112
    %v149 = vunpack.c.l.b16 %v113
    %v150 = vunpack.c.l.b16 %v114
    %v151 = vunpack.c.l.b16 %v115
    %v152 = vunpack.c.l.b16 %v116
    %v153 = vunpack.c.l.b16 %v117
    %v154 = vunpack.c.l.b16 %v118
    %v155 = vunpack.c.l.b16 %v119
    %v156 = vunpack.c.l.b16 %v120
    %v157 = vunpack.c.l.b16 %v121
    %v158 = vunpack.c.l.b16 %v122
    %v159 = vunpack.c.l.b16 %v123
    %v160 = vunpack.c.l.b16 %v124
    %v161 = vunpack.c.l.b16 %v125
    %v162 = vpack.c.b16 %v147, %v146
    %v163 = vpack.c.b16 %v149, %v148
    %v164 = vpack.c.b16 %v151, %v150
    %v165 = vpack.c.b16 %v153, %v152
    %v166 = vpack.c.b16 %v155, %v154
    %v167 = vpack.c.b16 %v157, %v156
    %v168 = vpack.c.b16 %v159, %v158
    %v169 = vpack.c.b16 %v161, %v160
    %178 = vmatpush.bf16.msra.mxu0 %v169
    %179 = vmatpush.bf16.msra.mxu0 %v168
    %180 = vmatpush.bf16.msra.mxu0 %v167
    %181 = vmatpush.bf16.msra.mxu0 %v166
    %182 = vmatpush.bf16.msra.mxu0 %v165
    %183 = vmatpush.bf16.msra.mxu0 %v164
    %184 = vmatpush.bf16.msra.mxu0 %v163
    %185 = vmatpush.bf16.msra.mxu0 %v162
    %186 = vmatmul.bf16.gmra.mxu0 %v109
    %v187 = vpop.f32.mrf.mxu0
    %v188 = vadd.f32 %v128, %v187
    %v189 = vpop.f32.mrf.mxu0
    %190 = vdwg.mxu0
    %v191 = vmax.f32 %v188, 0.0
    %v192 = vld [vmem:[#allocation7] sm:$0xf]
    %v193 = vld [vmem:[#allocation7 + $0x4] sm:$0xf]
    %v194 = vld [vmem:[#allocation7 + $0x8] sm:$0xf]
    %v195 = vld [vmem:[#allocation7 + $0xc] sm:$0xf]
    %v196 = vld [vmem:[#allocation7 + $0x10] sm:$0xf]
    %v197 = vld [vmem:[#allocation7 + $0x14] sm:$0xf]
    %v198 = vld [vmem:[#allocation7 + $0x18] sm:$0xf]
    %v199 = vld [vmem:[#allocation7 + $0x1c] sm:$0xf]
    %v200 = vld [vmem:[#allocation7 + $0x20] sm:$0xf]
    %v201 = vld [vmem:[#allocation7 + $0x24] sm:$0xf]
    %v202 = vld [vmem:[#allocation7 + $0x28] sm:$0xf]
    %v203 = vld [vmem:[#allocation7 + $0x2c] sm:$0xf]
    %v204 = vld [vmem:[#allocation7 + $0x30] sm:$0xf]
    %v205 = vld [vmem:[#allocation7 + $0x34] sm:$0xf]
    %v206 = vld [vmem:[#allocation7 + $0x38] sm:$0xf]
    %v207 = vld [vmem:[#allocation7 + $0x3c] sm:$0xf]
    %v208 = vld [vmem:[%s4] sm:$0x1]
    %v209 = vpack.c.bf16 %v191, %v191
    %v211 = vperm.slane %v208, 0
    %v229 = vunpack.c.l.b16 %v192
    %v230 = vunpack.c.l.b16 %v193
    %v231 = vunpack.c.l.b16 %v194
    %v232 = vunpack.c.l.b16 %v195
    %v233 = vunpack.c.l.b16 %v196
    %v234 = vunpack.c.l.b16 %v197
    %v235 = vunpack.c.l.b16 %v198
    %v236 = vunpack.c.l.b16 %v199
    %v237 = vunpack.c.l.b16 %v200
    %v238 = vunpack.c.l.b16 %v201
    %v239 = vunpack.c.l.b16 %v202
    %v240 = vunpack.c.l.b16 %v203
    %v241 = vunpack.c.l.b16 %v204
    %v242 = vunpack.c.l.b16 %v205
    %v243 = vunpack.c.l.b16 %v206
    %v244 = vunpack.c.l.b16 %v207
    %v245 = vpack.c.b16 %v230, %v229
    %v246 = vpack.c.b16 %v232, %v231
    %v247 = vpack.c.b16 %v234, %v233
    %v248 = vpack.c.b16 %v236, %v235
    %v249 = vpack.c.b16 %v238, %v237
    %v250 = vpack.c.b16 %v240, %v239
    %v251 = vpack.c.b16 %v242, %v241
    %v252 = vpack.c.b16 %v244, %v243
    %261 = vmatpush.bf16.msra.mxu0 %v252
    %262 = vmatpush.bf16.msra.mxu0 %v251
    %263 = vmatpush.bf16.msra.mxu0 %v250
    %264 = vmatpush.bf16.msra.mxu0 %v249
    %265 = vmatpush.bf16.msra.mxu0 %v248
    %266 = vmatpush.bf16.msra.mxu0 %v247
    %267 = vmatpush.bf16.msra.mxu0 %v246
    %268 = vmatpush.bf16.msra.mxu0 %v245
    %269 = vmatmul.bf16.gmra.mxu0 %v209
    %v270 = vpop.f32.mrf.mxu0
    %v271 = vadd.f32 %v211, %v270
    %v272 = vpop.f32.mrf.mxu0
    %273 = vdwg.mxu0
    %v274 = vmax.f32 %v271, 0.0
    %v275 = vld [vmem:[#allocation8] sm:$0xf]
    %v276 = vld [vmem:[#allocation8 + $0x4] sm:$0xf]
    %v277 = vld [vmem:[#allocation8 + $0x8] sm:$0xf]
    %v278 = vld [vmem:[#allocation8 + $0xc] sm:$0xf]
    %v279 = vld [vmem:[#allocation8 + $0x10] sm:$0xf]
    %v280 = vld [vmem:[#allocation8 + $0x14] sm:$0xf]
    %v281 = vld [vmem:[#allocation8 + $0x18] sm:$0xf]
    %v282 = vld [vmem:[#allocation8 + $0x1c] sm:$0xf]
    %v283 = vld [vmem:[#allocation8 + $0x20] sm:$0xf]
    %v284 = vld [vmem:[#allocation8 + $0x24] sm:$0xf]
    %v285 = vld [vmem:[#allocation8 + $0x28] sm:$0xf]
    %v286 = vld [vmem:[#allocation8 + $0x2c] sm:$0xf]
    %v287 = vld [vmem:[#allocation8 + $0x30] sm:$0xf]
    %v288 = vld [vmem:[#allocation8 + $0x34] sm:$0xf]
    %v289 = vld [vmem:[#allocation8 + $0x38] sm:$0xf]
    %v290 = vld [vmem:[#allocation8 + $0x3c] sm:$0xf]
    %v291 = vld [vmem:[%s6] sm:$0x1]
    %v292 = vpack.c.bf16 %v274, %v274
    %v294 = vperm.slane %v291, 0
    %v312 = vunpack.c.l.b16 %v275
    %v313 = vunpack.c.l.b16 %v276
    %v314 = vunpack.c.l.b16 %v277
    %v315 = vunpack.c.l.b16 %v278
    %v316 = vunpack.c.l.b16 %v279
    %v317 = vunpack.c.l.b16 %v280
    %v318 = vunpack.c.l.b16 %v281
    %v319 = vunpack.c.l.b16 %v282
    %v320 = vunpack.c.l.b16 %v283
    %v321 = vunpack.c.l.b16 %v284
    %v322 = vunpack.c.l.b16 %v285
    %v323 = vunpack.c.l.b16 %v286
    %v324 = vunpack.c.l.b16 %v287
    %v325 = vunpack.c.l.b16 %v288
    %v326 = vunpack.c.l.b16 %v289
    %v327 = vunpack.c.l.b16 %v290
    %v328 = vpack.c.b16 %v313, %v312
    %v329 = vpack.c.b16 %v315, %v314
    %v330 = vpack.c.b16 %v317, %v316
    %v331 = vpack.c.b16 %v319, %v318
    %v332 = vpack.c.b16 %v321, %v320
    %v333 = vpack.c.b16 %v323, %v322
    %v334 = vpack.c.b16 %v325, %v324
    %v335 = vpack.c.b16 %v327, %v326
    %344 = vmatpush.bf16.msra.mxu0 %v335
    %345 = vmatpush.bf16.msra.mxu0 %v334
    %346 = vmatpush.bf16.msra.mxu0 %v333
    %347 = vmatpush.bf16.msra.mxu0 %v332
    %348 = vmatpush.bf16.msra.mxu0 %v331
    %349 = vmatpush.bf16.msra.mxu0 %v330
    %350 = vmatpush.bf16.msra.mxu0 %v329
    %351 = vmatpush.bf16.msra.mxu0 %v328
    %352 = vmatmul.bf16.gmra.mxu0 %v292
    %v353 = vpop.f32.mrf.mxu0
    %v354 = vadd.f32 %v294, %v353
    %v355 = vpop.f32.mrf.mxu0
    %356 = vdwg.mxu0
    %v357 = vmax.f32 %v354, 0.0
    %v358 = vld [vmem:[#allocation10] sm:$0xf]
    %v359 = vld [vmem:[#allocation10 + $0x4] sm:$0xf]
    %v360 = vld [vmem:[#allocation10 + $0x8] sm:$0xf]
    %v361 = vld [vmem:[#allocation10 + $0xc] sm:$0xf]
    %v362 = vld [vmem:[#allocation10 + $0x10] sm:$0xf]
    %v363 = vld [vmem:[#allocation10 + $0x14] sm:$0xf]
    %v364 = vld [vmem:[#allocation10 + $0x18] sm:$0xf]
    %v365 = vld [vmem:[#allocation10 + $0x1c] sm:$0xf]
    %v366 = vld [vmem:[#allocation10 + $0x20] sm:$0xf]
    %v367 = vld [vmem:[#allocation10 + $0x24] sm:$0xf]
    %v368 = vld [vmem:[#allocation10 + $0x28] sm:$0xf]
    %v369 = vld [vmem:[#allocation10 + $0x2c] sm:$0xf]
    %v370 = vld [vmem:[#allocation10 + $0x30] sm:$0xf]
    %v371 = vld [vmem:[#allocation10 + $0x34] sm:$0xf]
    %v372 = vld [vmem:[#allocation10 + $0x38] sm:$0xf]
    %v373 = vld [vmem:[#allocation10 + $0x3c] sm:$0xf]
    %v374 = vld [vmem:[%s8] sm:$0x1]
    %v375 = vpack.c.bf16 %v357, %v357
    %v377 = vperm.slane %v374, 0
    %v395 = vunpack.c.l.b16 %v358
    %v396 = vunpack.c.l.b16 %v359
    %v397 = vunpack.c.l.b16 %v360
    %v398 = vunpack.c.l.b16 %v361
    %v399 = vunpack.c.l.b16 %v362
    %v400 = vunpack.c.l.b16 %v363
    %v401 = vunpack.c.l.b16 %v364
    %v402 = vunpack.c.l.b16 %v365
    %v403 = vunpack.c.l.b16 %v366
    %v404 = vunpack.c.l.b16 %v367
    %v405 = vunpack.c.l.b16 %v368
    %v406 = vunpack.c.l.b16 %v369
    %v407 = vunpack.c.l.b16 %v370
    %v408 = vunpack.c.l.b16 %v371
    %v409 = vunpack.c.l.b16 %v372
    %v410 = vunpack.c.l.b16 %v373
    %v411 = vpack.c.b16 %v396, %v395
    %v412 = vpack.c.b16 %v398, %v397
    %v413 = vpack.c.b16 %v400, %v399
    %v414 = vpack.c.b16 %v402, %v401
    %v415 = vpack.c.b16 %v404, %v403
    %v416 = vpack.c.b16 %v406, %v405
    %v417 = vpack.c.b16 %v408, %v407
    %v418 = vpack.c.b16 %v410, %v409
    %427 = vmatpush.bf16.msra.mxu0 %v418
    %428 = vmatpush.bf16.msra.mxu0 %v417
    %429 = vmatpush.bf16.msra.mxu0 %v416
    %430 = vmatpush.bf16.msra.mxu0 %v415
    %431 = vmatpush.bf16.msra.mxu0 %v414
    %432 = vmatpush.bf16.msra.mxu0 %v413
    %433 = vmatpush.bf16.msra.mxu0 %v412
    %434 = vmatpush.bf16.msra.mxu0 %v411
    %435 = vmatmul.bf16.gmra.mxu0 %v375
    %v436 = vpop.f32.mrf.mxu0
    %v437 = vadd.f32 %v377, %v436
    %v438 = vpop.f32.mrf.mxu0
    %439 = vdwg.mxu0
    %v440 = vsub.f32 0.0, %v437
    %v441 = vmul.f32 %v440, 1.442695
    %v442 = vpow.pop %v441
    %v443 = vadd.f32 %v442, 1.0
    %v444 = vrcp.pop %v443
    %v445 = vmul.f32 %v443, %v444
    %v446 = vsub.f32 1.0, %v445
    %v447 = vmul.f32 %v444, %v446
    %v448 = vadd.f32 %v444, %v447
    %vm449 = vweird.f32 %v443
    %vm450 = vweird.f32 %v444
    %vm451 = vmor %vm449, %vm450
    %v452 = vsel %vm451, %v444, %v448
    %v453 = vand.u32 2147483647, %v443
    %vm454 = vcmp.eq.f32.partialorder %v453, 8.507059e+37
    %v455 = vand.u32 %v443, 2147483648
    %v456 = vor.u32 1.1754944e-38, %v455
    %v457 = vsel %vm454, %v456, %v452
    %v458 = vmul.f32 1.0, %v457
    %459 = vst [vmem:[#allocation11] sm:$0xff] %v458
    // Predicated region
    $region58: #{tpu_custom_call.1} parent=1 // pred_check
      _
    $region59: #{tpu_custom_call.1} parent=1 // pred_check_branch
      %461 = sbr.rel (0) target = $region61
    $region60: #{tpu_custom_call.1} parent=1 // pred_region
      %463 = vsyncadd [#allocation4], 0
      %s465 = sshll.u32 [#allocation11], 4
      %s466 = int_to_ptr.vmem [resolvable:$true] %s465
      %s467 = sshll.u32 %s9, 4
      %s468 = int_to_ptr.hbm [resolvable:$true] %s467
      %470 = dma.vmem_to_hbm [thread:$0]  %s466, 128, %s468, [#allocation4]
    $region61: #{tpu_custom_call.1} parent=1 // pred_fallthru
      _
    // Predicated region
    $region62: #{tpu_custom_call.1} parent=1 // pred_check
      _
    $region63: #{tpu_custom_call.1} parent=1 // pred_check_branch
      %472 = sbr.rel (0) target = $region65
    $region64: #{tpu_custom_call.1} parent=1 // pred_region
      %474 = dma.done [#allocation4], 128
    $region65: #{tpu_custom_call.1} parent=1 // pred_fallthru
      _
    %475 = vsyncpa [#allocation3], 1
    %476 = vsyncpa [#allocation6], 1
    %477 = vsyncpa [#allocation9], 1
    %478 = vsyncpa [#allocation4], 1

// kernel: tpu_custom_call.1
$region0: #{tpu_custom_call.1}
  #allocation0 [shape = 'u32[]', space=smem, size = 0x4, offset = 0x4, fixed_abs, tag = 'smem constant byte address 0x4 - core index']
  #allocation1 [shape = 'u32[72,128]{1,0:T(1,128)}', space=vmem, size = 0x9000, scoped, tag = 'internal scratch']
  %s0 = inlined_call_operand.hbm [shape: bf16[8,128], index: 0, kind: input, shape index: {}]
  %s1 = inlined_call_operand.hbm [shape: bf16[128,128], index: 1, kind: input, shape index: {}]
  %s2 = inlined_call_operand.vmem [shape: f32[1,128], index: 2, kind: input, shape index: {}]
  %s3 = inlined_call_operand.hbm [shape: bf16[128,128], index: 3, kind: input, shape index: {}]
  %s4 = inlined_call_operand.vmem [shape: f32[1,128], index: 4, kind: input, shape index: {}]
  %s5 = inlined_call_operand.hbm [shape: bf16[128,128], index: 5, kind: input, shape index: {}]
  %s6 = inlined_call_operand.vmem [shape: f32[1,128], index: 6, kind: input, shape index: {}]
  %s7 = inlined_call_operand.hbm [shape: bf16[128,128], index: 7, kind: input, shape index: {}]
  %s8 = inlined_call_operand.vmem [shape: f32[1,128], index: 8, kind: input, shape index: {}]
  %s9 = inlined_call_operand.hbm [shape: f32[8,128], index: 9, kind: output, shape index: {}]
  %s10 = sld [smem:[#allocation0]]
  $region66: #{tpu_custom_call.1} parent=0
    _
  %s12 = ssub.s32 1, %s10
  %s13 = scalar_select 0, %s12, %s10
  $region1: #{tpu_custom_call.1} parent=0
    #allocation2 [shape = 'u8[2048]{0}', space=vmem, size = 0x800, scoped, tag = 'input window, operand 0, single buffered']
    #allocation3 [shape = 's32[1]{0}', space=sflag, size = 0x4, scoped, tag = 'scoped memory for tpu_custom_call.1']
    #allocation4 [shape = 's32[1]{0}', space=sflag, size = 0x4, scoped, tag = 'scoped memory for tpu_custom_call.1']
    #allocation5 [shape = 'u8[32768]{0}', space=vmem, size = 0x8000, scoped, tag = 'input window, operand 1, single buffered']
    #allocation6 [shape = 's32[1]{0}', space=sflag, size = 0x4, scoped, tag = 'scoped memory for tpu_custom_call.1']
    #allocation7 [shape = 'u8[32768]{0}', space=vmem, size = 0x8000, scoped, tag = 'input window, operand 3, single buffered']
    #allocation8 [shape = 'u8[32768]{0}', space=vmem, size = 0x8000, scoped, tag = 'input window, operand 5, single buffered']
    #allocation9 [shape = 's32[1]{0}', space=sflag, size = 0x4, scoped, tag = 'scoped memory for tpu_custom_call.1']
    #allocation10 [shape = 'u8[32768]{0}', space=vmem, size = 0x8000, scoped, tag = 'input window, operand 7, single buffered']
    #allocation11 [shape = 'u8[4096]{0}', space=vmem, size = 0x1000, scoped, tag = 'output window, operand 0, single buffered']
    %14 = vsyncpa [#allocation3], 0
    %15 = vsyncpa [#allocation6], 0
    %16 = vsyncpa [#allocation9], 0
    %17 = vsyncpa [#allocation4], 0
    // Predicated region
    $region2: #{tpu_custom_call.1} parent=1 // pred_check
      _
    $region3: #{tpu_custom_call.1} parent=1 // pred_check_branch
      %19 = sbr.rel (0) target = $region5
    $region4: #{tpu_custom_call.1} parent=1 // pred_region
      %21 = vsyncadd [#allocation3], 0
      %s23 = sshll.u32 %s0, 4
      %s24 = int_to_ptr.hbm [resolvable:$true] %s23
      %s25 = sshll.u32 [#allocation2], 4
      %s26 = int_to_ptr.vmem [resolvable:$true] %s25
      %28 = dma.hbm_to_vmem [thread:$0]  %s24, 64, %s26, [#allocation3]
    $region5: #{tpu_custom_call.1} parent=1 // pred_fallthru
      _
    // Predicated region
    $region6: #{tpu_custom_call.1} parent=1 // pred_check
      _
    $region7: #{tpu_custom_call.1} parent=1 // pred_check_branch
      %30 = sbr.rel (0) target = $region9
    $region8: #{tpu_custom_call.1} parent=1 // pred_region
      %32 = vsyncadd [#allocation6], 0
      %s33 = sshll.u32 %s1, 4
      %s34 = int_to_ptr.hbm [resolvable:$true] %s33
      %s35 = sshll.u32 [#allocation5], 4
      %s36 = int_to_ptr.vmem [resolvable:$true] %s35
      %41 = dma.hbm_to_vmem [thread:$0]  %s34, 1024, %s36, [#allocation6], 64, 64, 4
    $region9: #{tpu_custom_call.1} parent=1 // pred_fallthru
      _
    // Predicated region
    $region10: #{tpu_custom_call.1} parent=1 // pred_check
      _
    $region11: #{tpu_custom_call.1} parent=1 // pred_check_branch
      %43 = sbr.rel (0) target = $region13
    $region12: #{tpu_custom_call.1} parent=1 // pred_region
      _
    $region13: #{tpu_custom_call.1} parent=1 // pred_fallthru
      _
    // Predicated region
    $region14: #{tpu_custom_call.1} parent=1 // pred_check
      _
    $region15: #{tpu_custom_call.1} parent=1 // pred_check_branch
      %45 = sbr.rel (0) target = $region17
    $region16: #{tpu_custom_call.1} parent=1 // pred_region
      %47 = vsyncadd [#allocation6], 0
      %s48 = sshll.u32 %s3, 4
      %s49 = int_to_ptr.hbm [resolvable:$true] %s48
      %s50 = sshll.u32 [#allocation7], 4
      %s51 = int_to_ptr.vmem [resolvable:$true] %s50
      %56 = dma.hbm_to_vmem [thread:$0]  %s49, 1024, %s51, [#allocation6], 64, 64, 4
    $region17: #{tpu_custom_call.1} parent=1 // pred_fallthru
      _
    // Predicated region
    $region18: #{tpu_custom_call.1} parent=1 // pred_check
      _
    $region19: #{tpu_custom_call.1} parent=1 // pred_check_branch
      %58 = sbr.rel (0) target = $region21
    $region20: #{tpu_custom_call.1} parent=1 // pred_region
      _
    $region21: #{tpu_custom_call.1} parent=1 // pred_fallthru
      _
    // Predicated region
    $region22: #{tpu_custom_call.1} parent=1 // pred_check
      _
    $region23: #{tpu_custom_call.1} parent=1 // pred_check_branch
      %60 = sbr.rel (0) target = $region25
    $region24: #{tpu_custom_call.1} parent=1 // pred_region
      %62 = vsyncadd [#allocation9], 0
      %s63 = sshll.u32 %s5, 4
      %s64 = int_to_ptr.hbm [resolvable:$true] %s63
      %s65 = sshll.u32 [#allocation8], 4
      %s66 = int_to_ptr.vmem [resolvable:$true] %s65
      %71 = dma.hbm_to_vmem [thread:$0]  %s64, 1024, %s66, [#allocation9], 64, 64, 4
    $region25: #{tpu_custom_call.1} parent=1 // pred_fallthru
      _
    // Predicated region
    $region26: #{tpu_custom_call.1} parent=1 // pred_check
      _
    $region27: #{tpu_custom_call.1} parent=1 // pred_check_branch
      %73 = sbr.rel (0) target = $region29
    $region28: #{tpu_custom_call.1} parent=1 // pred_region
      _
    $region29: #{tpu_custom_call.1} parent=1 // pred_fallthru
      _
    // Predicated region
    $region30: #{tpu_custom_call.1} parent=1 // pred_check
      _
    $region31: #{tpu_custom_call.1} parent=1 // pred_check_branch
      %75 = sbr.rel (0) target = $region33
    $region32: #{tpu_custom_call.1} parent=1 // pred_region
      %77 = vsyncadd [#allocation9], 0
      %s78 = sshll.u32 %s7, 4
      %s79 = int_to_ptr.hbm [resolvable:$true] %s78
      %s80 = sshll.u32 [#allocation10], 4
      %s81 = int_to_ptr.vmem [resolvable:$true] %s80
      %86 = dma.hbm_to_vmem [thread:$0]  %s79, 1024, %s81, [#allocation9], 64, 64, 4
    $region33: #{tpu_custom_call.1} parent=1 // pred_fallthru
      _
    // Predicated region
    $region34: #{tpu_custom_call.1} parent=1 // pred_check
      _
    $region35: #{tpu_custom_call.1} parent=1 // pred_check_branch
      %88 = sbr.rel (0) target = $region37
    $region36: #{tpu_custom_call.1} parent=1 // pred_region
      _
    $region37: #{tpu_custom_call.1} parent=1 // pred_fallthru
      _
    // Predicated region
    $region38: #{tpu_custom_call.1} parent=1 // pred_check
      _
    $region39: #{tpu_custom_call.1} parent=1 // pred_check_branch
      %90 = sbr.rel (0) target = $region41
    $region40: #{tpu_custom_call.1} parent=1 // pred_region
      %92 = dma.done [#allocation3], 64
    $region41: #{tpu_custom_call.1} parent=1 // pred_fallthru
      _
    // Predicated region
    $region42: #{tpu_custom_call.1} parent=1 // pred_check
      _
    $region43: #{tpu_custom_call.1} parent=1 // pred_check_branch
      %94 = sbr.rel (0) target = $region45
    $region44: #{tpu_custom_call.1} parent=1 // pred_region
      %96 = dma.done [#allocation6], 1024
    $region45: #{tpu_custom_call.1} parent=1 // pred_fallthru
      _
    // Predicated region
    $region46: #{tpu_custom_call.1} parent=1 // pred_check
      _
    $region47: #{tpu_custom_call.1} parent=1 // pred_check_branch
      %98 = sbr.rel (0) target = $region49
    $region48: #{tpu_custom_call.1} parent=1 // pred_region
      %100 = dma.done [#allocation6], 1024
    $region49: #{tpu_custom_call.1} parent=1 // pred_fallthru
      _
    // Predicated region
    $region50: #{tpu_custom_call.1} parent=1 // pred_check
      _
    $region51: #{tpu_custom_call.1} parent=1 // pred_check_branch
      %102 = sbr.rel (0) target = $region53
    $region52: #{tpu_custom_call.1} parent=1 // pred_region
      %104 = dma.done [#allocation9], 1024
    $region53: #{tpu_custom_call.1} parent=1 // pred_fallthru
      _
    // Predicated region
    $region54: #{tpu_custom_call.1} parent=1 // pred_check
      _
    $region55: #{tpu_custom_call.1} parent=1 // pred_check_branch
      %106 = sbr.rel (0) target = $region57
    $region56: #{tpu_custom_call.1} parent=1 // pred_region
      %108 = dma.done [#allocation9], 1024
    $region57: #{tpu_custom_call.1} parent=1 // pred_fallthru
      _
    %v109 = vld [vmem:[#allocation2] sm:$0xf]
    %v110 = vld [vmem:[#allocation5] sm:$0xf]
    %v111 = vld [vmem:[#allocation5 + $0x4] sm:$0xf]
    %v112 = vld [vmem:[#allocation5 + $0x8] sm:$0xf]
    %v113 = vld [vmem:[#allocation5 + $0xc] sm:$0xf]
    %v114 = vld [vmem:[#allocation5 + $0x10] sm:$0xf]
    %v115 = vld [vmem:[#allocation5 + $0x14] sm:$0xf]
    %v116 = vld [vmem:[#allocation5 + $0x18] sm:$0xf]
    %v117 = vld [vmem:[#allocation5 + $0x1c] sm:$0xf]
    %v118 = vld [vmem:[#allocation5 + $0x20] sm:$0xf]
    %v119 = vld [vmem:[#allocation5 + $0x24] sm:$0xf]
    %v120 = vld [vmem:[#allocation5 + $0x28] sm:$0xf]
    %v121 = vld [vmem:[#allocation5 + $0x2c] sm:$0xf]
    %v122 = vld [vmem:[#allocation5 + $0x30] sm:$0xf]
    %v123 = vld [vmem:[#allocation5 + $0x34] sm:$0xf]
    %v124 = vld [vmem:[#allocation5 + $0x38] sm:$0xf]
    %v125 = vld [vmem:[#allocation5 + $0x3c] sm:$0xf]
    %v126 = vld [vmem:[%s2] sm:$0x1]
    %v128 = vperm.slane %v126, 0
    %v146 = vunpack.c.l.b16 %v110
    %v147 = vunpack.c.l.b16 %v111
    %v148 = vunpack.c.l.b16 %v112
    %v149 = vunpack.c.l.b16 %v113
    %v150 = vunpack.c.l.b16 %v114
    %v151 = vunpack.c.l.b16 %v115
    %v152 = vunpack.c.l.b16 %v116
    %v153 = vunpack.c.l.b16 %v117
    %v154 = vunpack.c.l.b16 %v118
    %v155 = vunpack.c.l.b16 %v119
    %v156 = vunpack.c.l.b16 %v120
    %v157 = vunpack.c.l.b16 %v121
    %v158 = vunpack.c.l.b16 %v122
    %v159 = vunpack.c.l.b16 %v123
    %v160 = vunpack.c.l.b16 %v124
    %v161 = vunpack.c.l.b16 %v125
    %v162 = vpack.c.b16 %v147, %v146
    %v163 = vpack.c.b16 %v149, %v148
    %v164 = vpack.c.b16 %v151, %v150
    %v165 = vpack.c.b16 %v153, %v152
    %v166 = vpack.c.b16 %v155, %v154
    %v167 = vpack.c.b16 %v157, %v156
    %v168 = vpack.c.b16 %v159, %v158
    %v169 = vpack.c.b16 %v161, %v160
    %178 = vmatpush.bf16.msra.mxu0 %v169
    %179 = vmatpush.bf16.msra.mxu0 %v168
    %180 = vmatpush.bf16.msra.mxu0 %v167
    %181 = vmatpush.bf16.msra.mxu0 %v166
    %182 = vmatpush.bf16.msra.mxu0 %v165
    %183 = vmatpush.bf16.msra.mxu0 %v164
    %184 = vmatpush.bf16.msra.mxu0 %v163
    %185 = vmatpush.bf16.msra.mxu0 %v162
    %186 = vmatmul.bf16.gmra.mxu0 %v109
    %v187 = vpop.f32.mrf.mxu0
    %v188 = vadd.f32 %v128, %v187
    %v189 = vpop.f32.mrf.mxu0
    %190 = vdwg.mxu0
    %v191 = vmax.f32 %v188, 0.0
    %v192 = vld [vmem:[#allocation7] sm:$0xf]
    %v193 = vld [vmem:[#allocation7 + $0x4] sm:$0xf]
    %v194 = vld [vmem:[#allocation7 + $0x8] sm:$0xf]
    %v195 = vld [vmem:[#allocation7 + $0xc] sm:$0xf]
    %v196 = vld [vmem:[#allocation7 + $0x10] sm:$0xf]
    %v197 = vld [vmem:[#allocation7 + $0x14] sm:$0xf]
    %v198 = vld [vmem:[#allocation7 + $0x18] sm:$0xf]
    %v199 = vld [vmem:[#allocation7 + $0x1c] sm:$0xf]
    %v200 = vld [vmem:[#allocation7 + $0x20] sm:$0xf]
    %v201 = vld [vmem:[#allocation7 + $0x24] sm:$0xf]
    %v202 = vld [vmem:[#allocation7 + $0x28] sm:$0xf]
    %v203 = vld [vmem:[#allocation7 + $0x2c] sm:$0xf]
    %v204 = vld [vmem:[#allocation7 + $0x30] sm:$0xf]
    %v205 = vld [vmem:[#allocation7 + $0x34] sm:$0xf]
    %v206 = vld [vmem:[#allocation7 + $0x38] sm:$0xf]
    %v207 = vld [vmem:[#allocation7 + $0x3c] sm:$0xf]
    %v208 = vld [vmem:[%s4] sm:$0x1]
    %v209 = vpack.c.bf16 %v191, %v191
    %v211 = vperm.slane %v208, 0
    %v229 = vunpack.c.l.b16 %v192
    %v230 = vunpack.c.l.b16 %v193
    %v231 = vunpack.c.l.b16 %v194
    %v232 = vunpack.c.l.b16 %v195
    %v233 = vunpack.c.l.b16 %v196
    %v234 = vunpack.c.l.b16 %v197
    %v235 = vunpack.c.l.b16 %v198
    %v236 = vunpack.c.l.b16 %v199
    %v237 = vunpack.c.l.b16 %v200
    %v238 = vunpack.c.l.b16 %v201
    %v239 = vunpack.c.l.b16 %v202
    %v240 = vunpack.c.l.b16 %v203
    %v241 = vunpack.c.l.b16 %v204
    %v242 = vunpack.c.l.b16 %v205
    %v243 = vunpack.c.l.b16 %v206
    %v244 = vunpack.c.l.b16 %v207
    %v245 = vpack.c.b16 %v230, %v229
    %v246 = vpack.c.b16 %v232, %v231
    %v247 = vpack.c.b16 %v234, %v233
    %v248 = vpack.c.b16 %v236, %v235
    %v249 = vpack.c.b16 %v238, %v237
    %v250 = vpack.c.b16 %v240, %v239
    %v251 = vpack.c.b16 %v242, %v241
    %v252 = vpack.c.b16 %v244, %v243
    %261 = vmatpush.bf16.msra.mxu0 %v252
    %262 = vmatpush.bf16.msra.mxu0 %v251
    %263 = vmatpush.bf16.msra.mxu0 %v250
    %264 = vmatpush.bf16.msra.mxu0 %v249
    %265 = vmatpush.bf16.msra.mxu0 %v248
    %266 = vmatpush.bf16.msra.mxu0 %v247
    %267 = vmatpush.bf16.msra.mxu0 %v246
    %268 = vmatpush.bf16.msra.mxu0 %v245
    %269 = vmatmul.bf16.gmra.mxu0 %v209
    %v270 = vpop.f32.mrf.mxu0
    %v271 = vadd.f32 %v211, %v270
    %v272 = vpop.f32.mrf.mxu0
    %273 = vdwg.mxu0
    %v274 = vmax.f32 %v271, 0.0
    %v275 = vld [vmem:[#allocation8] sm:$0xf]
    %v276 = vld [vmem:[#allocation8 + $0x4] sm:$0xf]
    %v277 = vld [vmem:[#allocation8 + $0x8] sm:$0xf]
    %v278 = vld [vmem:[#allocation8 + $0xc] sm:$0xf]
    %v279 = vld [vmem:[#allocation8 + $0x10] sm:$0xf]
    %v280 = vld [vmem:[#allocation8 + $0x14] sm:$0xf]
    %v281 = vld [vmem:[#allocation8 + $0x18] sm:$0xf]
    %v282 = vld [vmem:[#allocation8 + $0x1c] sm:$0xf]
    %v283 = vld [vmem:[#allocation8 + $0x20] sm:$0xf]
    %v284 = vld [vmem:[#allocation8 + $0x24] sm:$0xf]
    %v285 = vld [vmem:[#allocation8 + $0x28] sm:$0xf]
    %v286 = vld [vmem:[#allocation8 + $0x2c] sm:$0xf]
    %v287 = vld [vmem:[#allocation8 + $0x30] sm:$0xf]
    %v288 = vld [vmem:[#allocation8 + $0x34] sm:$0xf]
    %v289 = vld [vmem:[#allocation8 + $0x38] sm:$0xf]
    %v290 = vld [vmem:[#allocation8 + $0x3c] sm:$0xf]
    %v291 = vld [vmem:[%s6] sm:$0x1]
    %v292 = vpack.c.bf16 %v274, %v274
    %v294 = vperm.slane %v291, 0
    %v312 = vunpack.c.l.b16 %v275
    %v313 = vunpack.c.l.b16 %v276
    %v314 = vunpack.c.l.b16 %v277
    %v315 = vunpack.c.l.b16 %v278
    %v316 = vunpack.c.l.b16 %v279
    %v317 = vunpack.c.l.b16 %v280
    %v318 = vunpack.c.l.b16 %v281
    %v319 = vunpack.c.l.b16 %v282
    %v320 = vunpack.c.l.b16 %v283
    %v321 = vunpack.c.l.b16 %v284
    %v322 = vunpack.c.l.b16 %v285
    %v323 = vunpack.c.l.b16 %v286
    %v324 = vunpack.c.l.b16 %v287
    %v325 = vunpack.c.l.b16 %v288
    %v326 = vunpack.c.l.b16 %v289
    %v327 = vunpack.c.l.b16 %v290
    %v328 = vpack.c.b16 %v313, %v312
    %v329 = vpack.c.b16 %v315, %v314
    %v330 = vpack.c.b16 %v317, %v316
    %v331 = vpack.c.b16 %v319, %v318
    %v332 = vpack.c.b16 %v321, %v320
    %v333 = vpack.c.b16 %v323, %v322
    %v334 = vpack.c.b16 %v325, %v324
    %v335 = vpack.c.b16 %v327, %v326
    %344 = vmatpush.bf16.msra.mxu0 %v335
    %345 = vmatpush.bf16.msra.mxu0 %v334
    %346 = vmatpush.bf16.msra.mxu0 %v333
    %347 = vmatpush.bf16.msra.mxu0 %v332
    %348 = vmatpush.bf16.msra.mxu0 %v331
    %349 = vmatpush.bf16.msra.mxu0 %v330
    %350 = vmatpush.bf16.msra.mxu0 %v329
    %351 = vmatpush.bf16.msra.mxu0 %v328
    %352 = vmatmul.bf16.gmra.mxu0 %v292
    %v353 = vpop.f32.mrf.mxu0
    %v354 = vadd.f32 %v294, %v353
    %v355 = vpop.f32.mrf.mxu0
    %356 = vdwg.mxu0
    %v357 = vmax.f32 %v354, 0.0
    %v358 = vld [vmem:[#allocation10] sm:$0xf]
    %v359 = vld [vmem:[#allocation10 + $0x4] sm:$0xf]
    %v360 = vld [vmem:[#allocation10 + $0x8] sm:$0xf]
    %v361 = vld [vmem:[#allocation10 + $0xc] sm:$0xf]
    %v362 = vld [vmem:[#allocation10 + $0x10] sm:$0xf]
    %v363 = vld [vmem:[#allocation10 + $0x14] sm:$0xf]
    %v364 = vld [vmem:[#allocation10 + $0x18] sm:$0xf]
    %v365 = vld [vmem:[#allocation10 + $0x1c] sm:$0xf]
    %v366 = vld [vmem:[#allocation10 + $0x20] sm:$0xf]
    %v367 = vld [vmem:[#allocation10 + $0x24] sm:$0xf]
    %v368 = vld [vmem:[#allocation10 + $0x28] sm:$0xf]
    %v369 = vld [vmem:[#allocation10 + $0x2c] sm:$0xf]
    %v370 = vld [vmem:[#allocation10 + $0x30] sm:$0xf]
    %v371 = vld [vmem:[#allocation10 + $0x34] sm:$0xf]
    %v372 = vld [vmem:[#allocation10 + $0x38] sm:$0xf]
    %v373 = vld [vmem:[#allocation10 + $0x3c] sm:$0xf]
    %v374 = vld [vmem:[%s8] sm:$0x1]
    %v375 = vpack.c.bf16 %v357, %v357
    %v377 = vperm.slane %v374, 0
    %v395 = vunpack.c.l.b16 %v358
    %v396 = vunpack.c.l.b16 %v359
    %v397 = vunpack.c.l.b16 %v360
    %v398 = vunpack.c.l.b16 %v361
    %v399 = vunpack.c.l.b16 %v362
    %v400 = vunpack.c.l.b16 %v363
    %v401 = vunpack.c.l.b16 %v364
    %v402 = vunpack.c.l.b16 %v365
    %v403 = vunpack.c.l.b16 %v366
    %v404 = vunpack.c.l.b16 %v367
    %v405 = vunpack.c.l.b16 %v368
    %v406 = vunpack.c.l.b16 %v369
    %v407 = vunpack.c.l.b16 %v370
    %v408 = vunpack.c.l.b16 %v371
    %v409 = vunpack.c.l.b16 %v372
    %v410 = vunpack.c.l.b16 %v373
    %v411 = vpack.c.b16 %v396, %v395
    %v412 = vpack.c.b16 %v398, %v397
    %v413 = vpack.c.b16 %v400, %v399
    %v414 = vpack.c.b16 %v402, %v401
    %v415 = vpack.c.b16 %v404, %v403
    %v416 = vpack.c.b16 %v406, %v405
    %v417 = vpack.c.b16 %v408, %v407
    %v418 = vpack.c.b16 %v410, %v409
    %427 = vmatpush.bf16.msra.mxu0 %v418
    %428 = vmatpush.bf16.msra.mxu0 %v417
    %429 = vmatpush.bf16.msra.mxu0 %v416
    %430 = vmatpush.bf16.msra.mxu0 %v415
    %431 = vmatpush.bf16.msra.mxu0 %v414
    %432 = vmatpush.bf16.msra.mxu0 %v413
    %433 = vmatpush.bf16.msra.mxu0 %v412
    %434 = vmatpush.bf16.msra.mxu0 %v411
    %435 = vmatmul.bf16.gmra.mxu0 %v375
    %v436 = vpop.f32.mrf.mxu0
    %v437 = vadd.f32 %v377, %v436
    %v438 = vpop.f32.mrf.mxu0
    %439 = vdwg.mxu0
    %v440 = vsub.f32 0.0, %v437
    %v441 = vmul.f32 %v440, 1.442695
    %v442 = vpow.pop %v441
    %v443 = vadd.f32 %v442, 1.0
    %v444 = vrcp.pop %v443
    %v445 = vmul.f32 %v443, %v444
    %v446 = vsub.f32 1.0, %v445
    %v447 = vmul.f32 %v444, %v446
    %v448 = vadd.f32 %v444, %v447
    %vm449 = vweird.f32 %v443
    %vm450 = vweird.f32 %v444
    %vm451 = vmor %vm449, %vm450
    %v452 = vsel %vm451, %v444, %v448
    %v453 = vand.u32 2147483647, %v443
    %vm454 = vcmp.eq.f32.partialorder %v453, 8.507059e+37
    %v455 = vand.u32 %v443, 2147483648
    %v456 = vor.u32 1.1754944e-38, %v455
    %v457 = vsel %vm454, %v456, %v452
    %v458 = vmul.f32 1.0, %v457
    %459 = vst [vmem:[#allocation11] sm:$0xff] %v458
    // Predicated region
    $region58: #{tpu_custom_call.1} parent=1 // pred_check
      _
    $region59: #{tpu_custom_call.1} parent=1 // pred_check_branch
      %461 = sbr.rel (0) target = $region61
    $region60: #{tpu_custom_call.1} parent=1 // pred_region
      %463 = vsyncadd [#allocation4], 0
      %s465 = sshll.u32 [#allocation11], 4
      %s466 = int_to_ptr.vmem [resolvable:$true] %s465
      %s467 = sshll.u32 %s9, 4
      %s468 = int_to_ptr.hbm [resolvable:$true] %s467
      %470 = dma.vmem_to_hbm [thread:$0]  %s466, 128, %s468, [#allocation4]
    $region61: #{tpu_custom_call.1} parent=1 // pred_fallthru
      _
    // Predicated region
    $region62: #{tpu_custom_call.1} parent=1 // pred_check
      _
    $region63: #{tpu_custom_call.1} parent=1 // pred_check_branch
      %472 = sbr.rel (0) target = $region65
    $region64: #{tpu_custom_call.1} parent=1 // pred_region
      %474 = dma.done [#allocation4], 128
    $region65: #{tpu_custom_call.1} parent=1 // pred_fallthru
      _
    %475 = vsyncpa [#allocation3], 1
    %476 = vsyncpa [#allocation6], 1
    %477 = vsyncpa [#allocation9], 1
    %478 = vsyncpa [#allocation4], 1

</llo_original>
